<compile_context>
chip_gen: v7x
topology: tpu7x:2x2x1
jax: 0.10.0
libtpu: 0.0.40
codegen_flags: <defaults>
</compile_context>

<pallas_src>
import functools
import inspect

import jax
import jax.numpy as jnp
from jax import lax
from jax.experimental import pallas as pl
from jax.experimental.pallas import tpu as pltpu


def _round_up(x, m):
    return (x + m - 1) // m * m


def _cdiv(a, b):
    return (a + b - 1) // b


def _tpu_generation():
    """Best-effort TPU generation (5/6/7); defaults to 6 if unknown."""
    try:
        kind = jax.devices()[0].device_kind.lower()
    except Exception:
        return 6
    for g in (7, 6, 5, 4):
        if f"v{g}" in kind:
            return g
    return 6


def _vmem_capacity_bytes(gen):
    try:
        return int(pltpu.get_tpu_info().vmem_capacity_bytes)
    except Exception:
        return (64 if gen >= 7 else 128) * 1024 * 1024


try:
    _HAS_SINGLE_BUFFER = (
        hasattr(pl, "Buffered")
        and "pipeline_mode" in inspect.signature(pl.BlockSpec).parameters
    )
except Exception:  # pragma: no cover
    _HAS_SINGLE_BUFFER = False


def _const_spec(block_shape, single_buffer):
    """BlockSpec for an operand whose block never changes across the grid."""
    ndim = len(block_shape)
    index_map = lambda *_: (0,) * ndim
    if single_buffer and _HAS_SINGLE_BUFFER:
        return pl.BlockSpec(block_shape, index_map, pipeline_mode=pl.Buffered(1))
    return pl.BlockSpec(block_shape, index_map)


# --------------------------------------------------------------------------- kernels
_DN = (((1,), (0,)), ((), ()))  # [M, K] @ [K, N] — weights pre-transposed, no RHS xpose


def resblock_resident_kernel(x_ref, w1_ref, b1_ref, w2_ref, b2_ref, o_ref):
    """One (TB, D) batch tile with both weights VMEM-resident."""
    a0 = jnp.maximum(x_ref[...], 0.0).astype(jnp.bfloat16)
    h1 = lax.dot_general(a0, w1_ref[...], _DN,
                         preferred_element_type=jnp.float32) + b1_ref[...]
    a1 = jnp.maximum(h1, 0.0).astype(jnp.bfloat16)
    h2 = lax.dot_general(a1, w2_ref[...], _DN,
                         preferred_element_type=jnp.float32) + b2_ref[...]
    o_ref[...] = (x_ref[...] + h2).astype(o_ref.dtype)


def resblock_stream_kernel(x_ref, w1_ref, b1_ref, w2_ref, b2_ref, o_ref, acc_ref):
    """Weights streamed in TN-wide panels; f32 accumulator over the panel axis."""
    j = pl.program_id(1)

    @pl.when(j == 0)
    def _():
        acc_ref[...] = jnp.zeros_like(acc_ref)

    a0 = jnp.maximum(x_ref[...], 0.0).astype(jnp.bfloat16)
    # Layer-1 panel of output features j*TN:(j+1)*TN.
    h1 = lax.dot_general(a0, w1_ref[...], _DN,
                         preferred_element_type=jnp.float32) + b1_ref[...]
    a1 = jnp.maximum(h1, 0.0).astype(jnp.bfloat16)
    # Layer-2 partial contraction over that same panel of layer-1 features.
    acc_ref[...] += lax.dot_general(a1, w2_ref[...], _DN,
                                    preferred_element_type=jnp.float32)

    @pl.when(j == pl.num_programs(1) - 1)
    def _():
        o_ref[...] = (x_ref[...] + acc_ref[...] + b2_ref[...]).astype(o_ref.dtype)


# --------------------------------------------------------------------------- wrapper
@functools.partial(
    jax.jit,
    static_argnames=("block_b", "block_n", "force_stream", "single_buffer_weights"))
def _resblock_impl(x, w1, b1, w2, b2, *, block_b, block_n, force_stream,
                   single_buffer_weights):
    B, d_in = x.shape
    d_out = w1.shape[0]
    assert d_in == d_out, "ResBlock residual requires in_size == out_size"

    gen = _tpu_generation()
    num_cores = 2 if gen >= 7 else 1
    vmem_cap = _vmem_capacity_bytes(gen)
    # Leave headroom for Mosaic internal scratch / semaphores (tighter on v7x).
    vmem_budget = int(vmem_cap * (0.80 if gen >= 7 else 0.85))

    # Feature (lane) padding: 256 on v6e/v7x (256x256 MXU) when useful, else 128.
    lane_mult = 256 if (gen >= 6 and d_in > 128) else 128
    D = _round_up(d_in, lane_mult)

    # Batch tile: multiple of 16 (bf16 sublane packing); on v7x ensure >= 2 grid steps
    # so the "parallel" axis can split across both TensorCores.
    tb_cap = block_b if block_b is not None else (256 if gen >= 7 else 512)
    TB = max(16, min(_round_up(tb_cap, 16), _round_up(_cdiv(B, num_cores), 16)))

    single_buf = bool(single_buffer_weights) and _HAS_SINGLE_BUFFER
    wbuf = 1 if single_buf else 2
    weight_bytes_resident = wbuf * (2 * D * D * 2 + 2 * D * 4)  # bf16 weights + f32 biases

    def _resident_need(tb):
        acts = 2 * 2 * tb * D * 4          # x & out blocks, double-buffered
        temps = 3 * tb * D * 4             # a0/h1/a1/h2 in-kernel temporaries (approx)
        return weight_bytes_resident + acts + temps

    use_stream = bool(force_stream) or _resident_need(16) > vmem_budget

    TN = None
    if not use_stream:
        while _resident_need(TB) > vmem_budget and TB > 16:
            TB = max(16, _round_up(TB // 2, 16))
        if _resident_need(TB) > vmem_budget:
            use_stream = True
            TB = max(16, min(_round_up(tb_cap, 16), _round_up(_cdiv(B, num_cores), 16)))
        else:
            need = _resident_need(TB)

    if use_stream:
        if block_n is not None:
            TN = int(block_n)
        else:
            TN = next((t for t in (512, 256, 128) if D % t == 0), 128)
        assert D % TN == 0, "panel width must divide the padded feature dim"

        def _stream_need(tb):
            panels = 2 * (D * TN * 2 + TN * D * 2) + 2 * TN * 4 + 2 * D * 4
            acts = 2 * 2 * tb * D * 4 + tb * D * 4     # x/out double-buffered + acc scratch
            temps = 2 * tb * TN * 4 + tb * D * 4       # h1/a1 panel temps + partial product
            return panels + acts + temps

        while _stream_need(TB) > vmem_budget and TB > 16:
            TB = max(16, _round_up(TB // 2, 16))
        need = _stream_need(TB)

    Bp = _round_up(B, TB)
    n_b = Bp // TB

    # ---- pad (zero padding is exact for this block) and pre-transpose weights ----
    x_p = jnp.zeros((Bp, D), x.dtype).at[:B, :d_in].set(x)
    # PyTorch weights are [out, in]; store [in, out] so the kernel does plain [M,K]@[K,N].
    w1_p = jnp.zeros((D, D), jnp.bfloat16).at[:d_in, :d_out].set(
        w1.T.astype(jnp.bfloat16))
    w2_p = jnp.zeros((D, D), jnp.bfloat16).at[:d_out, :d_out].set(
        w2.T.astype(jnp.bfloat16))
    b1_p = jnp.zeros((1, D), jnp.float32).at[0, :d_out].set(b1.astype(jnp.float32))
    b2_p = jnp.zeros((1, D), jnp.float32).at[0, :d_out].set(b2.astype(jnp.float32))

    vmem_limit = int(min(max(int(1.25 * need), 32 * 1024 * 1024), vmem_budget))

    if not use_stream:
        cost = pl.CostEstimate(
            flops=2 * 2 * Bp * D * D,
            transcendentals=0,
            bytes_accessed=2 * Bp * D * 4 + 2 * D * D * 2 + 2 * D * 4,
        )
        out_p = pl.pallas_call(
            resblock_resident_kernel,
            out_shape=jax.ShapeDtypeStruct((Bp, D), x.dtype),
            grid_spec=pltpu.PrefetchScalarGridSpec(
                num_scalar_prefetch=0,
                grid=(n_b,),
                in_specs=[
                    pl.BlockSpec((TB, D), lambda i: (i, 0)),   # x: tiled over batch
                    _const_spec((D, D), single_buf),           # w1: VMEM-resident
                    _const_spec((1, D), single_buf),           # b1
                    _const_spec((D, D), single_buf),           # w2
                    _const_spec((1, D), single_buf),           # b2
                ],
                out_specs=pl.BlockSpec((TB, D), lambda i: (i, 0)),
            ),
            compiler_params=pltpu.CompilerParams(
                dimension_semantics=("parallel",),
                vmem_limit_bytes=vmem_limit,
            ),
            cost_estimate=cost,
        )(x_p, w1_p, b1_p, w2_p, b2_p)
    else:
        n_j = D // TN
        cost = pl.CostEstimate(
            flops=2 * 2 * Bp * D * D,
            transcendentals=0,
            bytes_accessed=2 * Bp * D * 4 + n_b * 2 * D * D * 2 + 2 * D * 4,
        )
        out_p = pl.pallas_call(
            resblock_stream_kernel,
            out_shape=jax.ShapeDtypeStruct((Bp, D), x.dtype),
            grid_spec=pltpu.PrefetchScalarGridSpec(
                num_scalar_prefetch=0,
                grid=(n_b, n_j),
                in_specs=[
                    pl.BlockSpec((TB, D), lambda i, j: (i, 0)),   # x (fetched once per i)
                    pl.BlockSpec((D, TN), lambda i, j: (0, j)),   # w1 column panel
                    pl.BlockSpec((1, TN), lambda i, j: (0, j)),   # b1 panel
                    pl.BlockSpec((TN, D), lambda i, j: (j, 0)),   # w2 row panel
                    _const_spec((1, D), single_buf),              # b2
                ],
                out_specs=pl.BlockSpec((TB, D), lambda i, j: (i, 0)),
                scratch_shapes=[pltpu.VMEM((TB, D), jnp.float32)],
            ),
            compiler_params=pltpu.CompilerParams(
                dimension_semantics=("parallel", "arbitrary"),
                vmem_limit_bytes=vmem_limit,
            ),
            cost_estimate=cost,
        )(x_p, w1_p, b1_p, w2_p, b2_p)

    return out_p[:B, :d_in]


def resblock_forward(x, w1, b1, w2, b2, *, block_b=None, block_n=None,
                     force_stream=False):
    """x: [B, D]; w1/w2: [D, D] (PyTorch [out, in] layout); b1/b2: [D]."""
    try:
        return _resblock_impl(x, w1, b1, w2, b2, block_b=block_b, block_n=block_n,
                              force_stream=force_stream, single_buffer_weights=True)
    except Exception:
        # Fallback for Pallas versions that reject single-buffered constant operands.
        return _resblock_impl(x, w1, b1, w2, b2, block_b=block_b, block_n=block_n,
                              force_stream=force_stream, single_buffer_weights=False)


# --------------------------------------------------------------------------- references
def reference_forward_f32(x, w1, b1, w2, b2):
    """Pure-JAX f32 reference matching the PyTorch module exactly."""
    a0 = jnp.maximum(x, 0.0)
    h1 = a0 @ w1.T + b1
    a1 = jnp.maximum(h1, 0.0)
    h2 = a1 @ w2.T + b2
    return x + h2


def reference_forward_bf16(x, w1, b1, w2, b2):
    """Same math with the kernel's bf16-input / f32-accumulate matmul rounding."""
    dn = (((1,), (1,)), ((), ()))
    a0 = jnp.maximum(x, 0.0).astype(jnp.bfloat16)
    h1 = lax.dot_general(a0, w1.astype(jnp.bfloat16), dn,
                         preferred_element_type=jnp.float32) + b1
    a1 = jnp.maximum(h1, 0.0).astype(jnp.bfloat16)
    h2 = lax.dot_general(a1, w2.astype(jnp.bfloat16), dn,
                         preferred_element_type=jnp.float32) + b2
    return x + h2


# --------------------------------------------------------------------------- test
if __name__ == "__main__":
    key = jax.random.PRNGKey(0)

    def make_params(k, d):
        k_w1, k_b1, k_w2, k_b2 = jax.random.split(k, 4)
        bound = 1.0 / (d ** 0.5)  # nn.Linear-style uniform init
        w1 = jax.random.uniform(k_w1, (d, d), minval=-bound, maxval=bound, dtype=jnp.float32)
        b1 = jax.random.uniform(k_b1, (d,), minval=-bound, maxval=bound, dtype=jnp.float32)
        w2 = jax.random.uniform(k_w2, (d, d), minval=-bound, maxval=bound, dtype=jnp.float32)
        b2 = jax.random.uniform(k_b2, (d,), minval=-bound, maxval=bound, dtype=jnp.float32)
        return w1, b1, w2, b2

    def check(out, x, w1, b1, w2, b2, name):
        assert out.shape == x.shape, name
        ref_b = reference_forward_bf16(x, w1, b1, w2, b2)
        ref_f = reference_forward_f32(x, w1, b1, w2, b2)
        assert jnp.allclose(out, ref_b, atol=2e-3, rtol=2e-3), f"{name}: mismatch vs bf16 ref"
        assert jnp.allclose(out, ref_f, atol=5e-2, rtol=5e-2), f"{name}: mismatch vs f32 ref"

    k0, k1, k2, k3, k4 = jax.random.split(key, 5)

    # Case 1: module-sized example (batch=2, hidden=32) — resident-weights path.
    x = jax.random.normal(k0, (2, 32), dtype=jnp.float32)
    params = make_params(k1, 32)
    out = jax.block_until_ready(resblock_forward(x, *params))
    check(out, x, *params, name="resident")

    # Case 2: multi-batch-tile resident path (exercises the batch grid).
    x2 = jax.random.normal(k2, (40, 32), dtype=jnp.float32)
    out2 = jax.block_until_ready(resblock_forward(x2, *params, block_b=16))
    check(out2, x2, *params, name="resident-tiled")

    # Case 3: streamed-weights path (forced), exercising the panel accumulator axis.
    x3 = jax.random.normal(k3, (20, 160), dtype=jnp.float32)
    params3 = make_params(k4, 160)
    out3 = jax.block_until_ready(
        resblock_forward(x3, *params3, force_stream=True, block_n=128))
    check(out3, x3, *params3, name="streamed")

    print("KERNEL_OK")
</pallas_src>

<mosaic_0001>
module attributes {stable_mosaic.version = 11 : i64} {
  func.func @resblock_resident_kernel(%arg0: i32, %arg1: memref<16x128xf32, #tpu.memory_space<vmem>>, %arg2: memref<128x128xbf16, #tpu.memory_space<vmem>>, %arg3: memref<1x128xf32, #tpu.memory_space<vmem>>, %arg4: memref<128x128xbf16, #tpu.memory_space<vmem>>, %arg5: memref<1x128xf32, #tpu.memory_space<vmem>>, %arg6: memref<16x128xf32, #tpu.memory_space<vmem>>) attributes {dimension_semantics = [#tpu.dimension_semantics<parallel>], iteration_bounds = array<i64: 1>, scalar_prefetch = 0 : i64, scratch_operands = 0 : i64, tpu.core_type = #tpu.core_type<tc>, window_params = [{transform_indices = @transform_0, window_bounds = array<i64: 16, 128>}, {pipeline_mode = #tpu.pipeline_mode<synchronous>, transform_indices = @transform_1, window_bounds = array<i64: 128, 128>}, {pipeline_mode = #tpu.pipeline_mode<synchronous>, transform_indices = @transform_2, window_bounds = array<i64: 1, 128>}, {pipeline_mode = #tpu.pipeline_mode<synchronous>, transform_indices = @transform_3, window_bounds = array<i64: 128, 128>}, {pipeline_mode = #tpu.pipeline_mode<synchronous>, transform_indices = @transform_4, window_bounds = array<i64: 1, 128>}, {transform_indices = @transform_5, window_bounds = array<i64: 16, 128>}]} {
    %c0 = arith.constant 0 : index
    %c0_0 = arith.constant 0 : index
    %0 = vector.load %arg1[%c0, %c0_0] : memref<16x128xf32, #tpu.memory_space<vmem>>, vector<16x128xf32>
    %cst = arith.constant 0.000000e+00 : f32
    %1 = vector.broadcast %cst : f32 to vector<16x128xf32>
    %2 = arith.maximumf %0, %1 : vector<16x128xf32>
    %3 = arith.truncf %2 : vector<16x128xf32> to vector<16x128xbf16>
    %c0_1 = arith.constant 0 : index
    %c0_2 = arith.constant 0 : index
    %4 = vector.load %arg2[%c0_1, %c0_2] : memref<128x128xbf16, #tpu.memory_space<vmem>>, vector<128x128xbf16>
    %cst_3 = arith.constant dense<0.000000e+00> : vector<16x128xf32>
    %5 = tpu.matmul %3, %4, %cst_3 {dimension_numbers = #tpu.dot_dimension_numbers<[1], [0], [0], [1], [0, 0, 1, 1], [], []>} : vector<16x128xbf16>, vector<128x128xbf16>, vector<16x128xf32> -> vector<16x128xf32>
    %c0_4 = arith.constant 0 : index
    %c0_5 = arith.constant 0 : index
    %6 = vector.load %arg3[%c0_4, %c0_5] : memref<1x128xf32, #tpu.memory_space<vmem>>, vector<1x128xf32>
    %7 = vector.broadcast %6 : vector<1x128xf32> to vector<16x128xf32>
    %8 = arith.addf %5, %7 : vector<16x128xf32>
    %cst_6 = arith.constant 0.000000e+00 : f32
    %9 = vector.broadcast %cst_6 : f32 to vector<16x128xf32>
    %10 = arith.maximumf %8, %9 : vector<16x128xf32>
    %11 = arith.truncf %10 : vector<16x128xf32> to vector<16x128xbf16>
    %c0_7 = arith.constant 0 : index
    %c0_8 = arith.constant 0 : index
    %12 = vector.load %arg4[%c0_7, %c0_8] : memref<128x128xbf16, #tpu.memory_space<vmem>>, vector<128x128xbf16>
    %cst_9 = arith.constant dense<0.000000e+00> : vector<16x128xf32>
    %13 = tpu.matmul %11, %12, %cst_9 {dimension_numbers = #tpu.dot_dimension_numbers<[1], [0], [0], [1], [0, 0, 1, 1], [], []>} : vector<16x128xbf16>, vector<128x128xbf16>, vector<16x128xf32> -> vector<16x128xf32>
    %c0_10 = arith.constant 0 : index
    %c0_11 = arith.constant 0 : index
    %14 = vector.load %arg5[%c0_10, %c0_11] : memref<1x128xf32, #tpu.memory_space<vmem>>, vector<1x128xf32>
    %15 = vector.broadcast %14 : vector<1x128xf32> to vector<16x128xf32>
    %16 = arith.addf %13, %15 : vector<16x128xf32>
    %c0_12 = arith.constant 0 : index
    %c0_13 = arith.constant 0 : index
    %17 = vector.load %arg1[%c0_12, %c0_13] : memref<16x128xf32, #tpu.memory_space<vmem>>, vector<16x128xf32>
    %18 = arith.addf %17, %16 : vector<16x128xf32>
    %c0_14 = arith.constant 0 : index
    %c0_15 = arith.constant 0 : index
    %19 = vector.load %arg6[%c0_14, %c0_15] : memref<16x128xf32, #tpu.memory_space<vmem>>, vector<16x128xf32>
    tpu.vector_store %arg6[%c0_14, %c0_15], %18 {strides = array<i32>} : memref<16x128xf32, #tpu.memory_space<vmem>>, vector<16x128xf32>,
    return
  }
  func.func @transform_0(%arg0: i32) -> (i32, i32) {
    %c0_i32 = arith.constant 0 : i32
    %c0_i32_0 = arith.constant 0 : i32
    return %arg0, %c0_i32 : i32, i32
  }
  func.func @transform_1(%arg0: i32) -> (i32, i32) {
    %c0_i32 = arith.constant 0 : i32
    %c0_i32_0 = arith.constant 0 : i32
    %c0_i32_1 = arith.constant 0 : i32
    return %c0_i32, %c0_i32_0 : i32, i32
  }
  func.func @transform_2(%arg0: i32) -> (i32, i32) {
    %c0_i32 = arith.constant 0 : i32
    %c0_i32_0 = arith.constant 0 : i32
    %c0_i32_1 = arith.constant 0 : i32
    return %c0_i32, %c0_i32_0 : i32, i32
  }
  func.func @transform_3(%arg0: i32) -> (i32, i32) {
    %c0_i32 = arith.constant 0 : i32
    %c0_i32_0 = arith.constant 0 : i32
    %c0_i32_1 = arith.constant 0 : i32
    return %c0_i32, %c0_i32_0 : i32, i32
  }
  func.func @transform_4(%arg0: i32) -> (i32, i32) {
    %c0_i32 = arith.constant 0 : i32
    %c0_i32_0 = arith.constant 0 : i32
    %c0_i32_1 = arith.constant 0 : i32
    return %c0_i32, %c0_i32_0 : i32, i32
  }
  func.func @transform_5(%arg0: i32) -> (i32, i32) {
    %c0_i32 = arith.constant 0 : i32
    %c0_i32_0 = arith.constant 0 : i32
    return %arg0, %c0_i32 : i32, i32
  }
}

module attributes {stable_mosaic.version = 11 : i64} {
  func.func @resblock_resident_kernel(%arg0: i32, %arg1: memref<16x128xf32, #tpu.memory_space<vmem>>, %arg2: memref<128x128xbf16, #tpu.memory_space<vmem>>, %arg3: memref<1x128xf32, #tpu.memory_space<vmem>>, %arg4: memref<128x128xbf16, #tpu.memory_space<vmem>>, %arg5: memref<1x128xf32, #tpu.memory_space<vmem>>, %arg6: memref<16x128xf32, #tpu.memory_space<vmem>>) attributes {dimension_semantics = [#tpu.dimension_semantics<parallel>], iteration_bounds = array<i64: 1>, scalar_prefetch = 0 : i64, scratch_operands = 0 : i64, tpu.core_type = #tpu.core_type<tc>, window_params = [{transform_indices = @transform_0, window_bounds = array<i64: 16, 128>}, {pipeline_mode = #tpu.pipeline_mode<synchronous>, transform_indices = @transform_1, window_bounds = array<i64: 128, 128>}, {pipeline_mode = #tpu.pipeline_mode<synchronous>, transform_indices = @transform_2, window_bounds = array<i64: 1, 128>}, {pipeline_mode = #tpu.pipeline_mode<synchronous>, transform_indices = @transform_3, window_bounds = array<i64: 128, 128>}, {pipeline_mode = #tpu.pipeline_mode<synchronous>, transform_indices = @transform_4, window_bounds = array<i64: 1, 128>}, {transform_indices = @transform_5, window_bounds = array<i64: 16, 128>}]} {
    %c0 = arith.constant 0 : index
    %c0_0 = arith.constant 0 : index
    %0 = vector.load %arg1[%c0, %c0_0] : memref<16x128xf32, #tpu.memory_space<vmem>>, vector<16x128xf32>
    %cst = arith.constant 0.000000e+00 : f32
    %1 = vector.broadcast %cst : f32 to vector<16x128xf32>
    %2 = arith.maximumf %0, %1 : vector<16x128xf32>
    %3 = arith.truncf %2 : vector<16x128xf32> to vector<16x128xbf16>
    %c0_1 = arith.constant 0 : index
    %c0_2 = arith.constant 0 : index
    %4 = vector.load %arg2[%c0_1, %c0_2] : memref<128x128xbf16, #tpu.memory_space<vmem>>, vector<128x128xbf16>
    %cst_3 = arith.constant dense<0.000000e+00> : vector<16x128xf32>
    %5 = tpu.matmul %3, %4, %cst_3 {dimension_numbers = #tpu.dot_dimension_numbers<[1], [0], [0], [1], [0, 0, 1, 1], [], []>} : vector<16x128xbf16>, vector<128x128xbf16>, vector<16x128xf32> -> vector<16x128xf32>
    %c0_4 = arith.constant 0 : index
    %c0_5 = arith.constant 0 : index
    %6 = vector.load %arg3[%c0_4, %c0_5] : memref<1x128xf32, #tpu.memory_space<vmem>>, vector<1x128xf32>
    %7 = vector.broadcast %6 : vector<1x128xf32> to vector<16x128xf32>
    %8 = arith.addf %5, %7 : vector<16x128xf32>
    %cst_6 = arith.constant 0.000000e+00 : f32
    %9 = vector.broadcast %cst_6 : f32 to vector<16x128xf32>
    %10 = arith.maximumf %8, %9 : vector<16x128xf32>
    %11 = arith.truncf %10 : vector<16x128xf32> to vector<16x128xbf16>
    %c0_7 = arith.constant 0 : index
    %c0_8 = arith.constant 0 : index
    %12 = vector.load %arg4[%c0_7, %c0_8] : memref<128x128xbf16, #tpu.memory_space<vmem>>, vector<128x128xbf16>
    %cst_9 = arith.constant dense<0.000000e+00> : vector<16x128xf32>
    %13 = tpu.matmul %11, %12, %cst_9 {dimension_numbers = #tpu.dot_dimension_numbers<[1], [0], [0], [1], [0, 0, 1, 1], [], []>} : vector<16x128xbf16>, vector<128x128xbf16>, vector<16x128xf32> -> vector<16x128xf32>
    %c0_10 = arith.constant 0 : index
    %c0_11 = arith.constant 0 : index
    %14 = vector.load %arg5[%c0_10, %c0_11] : memref<1x128xf32, #tpu.memory_space<vmem>>, vector<1x128xf32>
    %15 = vector.broadcast %14 : vector<1x128xf32> to vector<16x128xf32>
    %16 = arith.addf %13, %15 : vector<16x128xf32>
    %c0_12 = arith.constant 0 : index
    %c0_13 = arith.constant 0 : index
    %17 = vector.load %arg1[%c0_12, %c0_13] : memref<16x128xf32, #tpu.memory_space<vmem>>, vector<16x128xf32>
    %18 = arith.addf %17, %16 : vector<16x128xf32>
    %c0_14 = arith.constant 0 : index
    %c0_15 = arith.constant 0 : index
    %19 = vector.load %arg6[%c0_14, %c0_15] : memref<16x128xf32, #tpu.memory_space<vmem>>, vector<16x128xf32>
    tpu.vector_store %arg6[%c0_14, %c0_15], %18 {strides = array<i32>} : memref<16x128xf32, #tpu.memory_space<vmem>>, vector<16x128xf32>,
    return
  }
  func.func @transform_0(%arg0: i32) -> (i32, i32) {
    %c0_i32 = arith.constant 0 : i32
    %c0_i32_0 = arith.constant 0 : i32
    return %arg0, %c0_i32 : i32, i32
  }
  func.func @transform_1(%arg0: i32) -> (i32, i32) {
    %c0_i32 = arith.constant 0 : i32
    %c0_i32_0 = arith.constant 0 : i32
    %c0_i32_1 = arith.constant 0 : i32
    return %c0_i32, %c0_i32_0 : i32, i32
  }
  func.func @transform_2(%arg0: i32) -> (i32, i32) {
    %c0_i32 = arith.constant 0 : i32
    %c0_i32_0 = arith.constant 0 : i32
    %c0_i32_1 = arith.constant 0 : i32
    return %c0_i32, %c0_i32_0 : i32, i32
  }
  func.func @transform_3(%arg0: i32) -> (i32, i32) {
    %c0_i32 = arith.constant 0 : i32
    %c0_i32_0 = arith.constant 0 : i32
    %c0_i32_1 = arith.constant 0 : i32
    return %c0_i32, %c0_i32_0 : i32, i32
  }
  func.func @transform_4(%arg0: i32) -> (i32, i32) {
    %c0_i32 = arith.constant 0 : i32
    %c0_i32_0 = arith.constant 0 : i32
    %c0_i32_1 = arith.constant 0 : i32
    return %c0_i32, %c0_i32_0 : i32, i32
  }
  func.func @transform_5(%arg0: i32) -> (i32, i32) {
    %c0_i32 = arith.constant 0 : i32
    %c0_i32_0 = arith.constant 0 : i32
    return %arg0, %c0_i32 : i32, i32
  }
}

</mosaic_0001>

<llo_original>
// kernel: _resblock_impl.1
$region0: #{_resblock_impl.1}
  #allocation0 [shape = 'u32[]', space=smem, size = 0x4, offset = 0x4, fixed_abs, tag = 'smem constant byte address 0x4 - core index']
  #allocation1 [shape = 'u32[144,128]{1,0:T(1,128)}', space=vmem, size = 0x12000, scoped, tag = 'internal scratch']
  %s0 = inlined_call_operand.vmem [shape: f32[16,128], index: 0, kind: input, shape index: {}]
  %s1 = inlined_call_operand.vmem [shape: bf16[128,128], index: 1, kind: input, shape index: {}]
  %s2 = inlined_call_operand.vmem [shape: f32[1,128], index: 2, kind: input, shape index: {}]
  %s3 = inlined_call_operand.vmem [shape: bf16[128,128], index: 3, kind: input, shape index: {}]
  %s4 = inlined_call_operand.vmem [shape: f32[1,128], index: 4, kind: input, shape index: {}]
  %s5 = inlined_call_operand.vmem [shape: f32[16,128], index: 5, kind: output, shape index: {}]
  %s6 = sld [smem:[#allocation0]]
  $region30: #{_resblock_impl.1} parent=0
    _
  %s8 = ssub.s32 1, %s6
  %s9 = scalar_select 0, %s8, %s6
  // Predicated region
  $region2: #{_resblock_impl.1} parent=0 // pred_check
    _
  $region3: #{_resblock_impl.1} parent=0 // pred_check_branch
    %11 = sbr.rel (0) target = $region5
  $region4: #{_resblock_impl.1} parent=0 // pred_region
    _
  $region5: #{_resblock_impl.1} parent=0 // pred_fallthru
    _
  // Predicated region
  $region6: #{_resblock_impl.1} parent=0 // pred_check
    _
  $region7: #{_resblock_impl.1} parent=0 // pred_check_branch
    %13 = sbr.rel (0) target = $region9
  $region8: #{_resblock_impl.1} parent=0 // pred_region
    _
  $region9: #{_resblock_impl.1} parent=0 // pred_fallthru
    _
  // Predicated region
  $region10: #{_resblock_impl.1} parent=0 // pred_check
    _
  $region11: #{_resblock_impl.1} parent=0 // pred_check_branch
    %15 = sbr.rel (0) target = $region13
  $region12: #{_resblock_impl.1} parent=0 // pred_region
    _
  $region13: #{_resblock_impl.1} parent=0 // pred_fallthru
    _
  // Predicated region
  $region14: #{_resblock_impl.1} parent=0 // pred_check
    _
  $region15: #{_resblock_impl.1} parent=0 // pred_check_branch
    %17 = sbr.rel (0) target = $region17
  $region16: #{_resblock_impl.1} parent=0 // pred_region
    _
  $region17: #{_resblock_impl.1} parent=0 // pred_fallthru
    _
  // Predicated region
  $region18: #{_resblock_impl.1} parent=0 // pred_check
    _
  $region19: #{_resblock_impl.1} parent=0 // pred_check_branch
    %19 = sbr.rel (0) target = $region21
  $region20: #{_resblock_impl.1} parent=0 // pred_region
    _
  $region21: #{_resblock_impl.1} parent=0 // pred_fallthru
    _
  %v21 = vld [vmem:[%s0] sm:$0xff]
  %v22 = vld [vmem:[%s0 + $0x8] sm:$0xff]
  %v23 = vmax.f32 %v21, 0.0
  %v24 = vmax.f32 %v22, 0.0
  %v25 = vpack.c.bf16 %v24, %v23
  %v26 = vld [vmem:[%s1] sm:$0xf]
  %v27 = vld [vmem:[%s1 + $0x4] sm:$0xf]
  %v28 = vld [vmem:[%s1 + $0x8] sm:$0xf]
  %v29 = vld [vmem:[%s1 + $0xc] sm:$0xf]
  %v30 = vld [vmem:[%s1 + $0x10] sm:$0xf]
  %v31 = vld [vmem:[%s1 + $0x14] sm:$0xf]
  %v32 = vld [vmem:[%s1 + $0x18] sm:$0xf]
  %v33 = vld [vmem:[%s1 + $0x1c] sm:$0xf]
  %v34 = vld [vmem:[%s1 + $0x20] sm:$0xf]
  %v35 = vld [vmem:[%s1 + $0x24] sm:$0xf]
  %v36 = vld [vmem:[%s1 + $0x28] sm:$0xf]
  %v37 = vld [vmem:[%s1 + $0x2c] sm:$0xf]
  %v38 = vld [vmem:[%s1 + $0x30] sm:$0xf]
  %v39 = vld [vmem:[%s1 + $0x34] sm:$0xf]
  %v40 = vld [vmem:[%s1 + $0x38] sm:$0xf]
  %v41 = vld [vmem:[%s1 + $0x3c] sm:$0xf]
  %v42 = vld [vmem:[%s2] sm:$0x1]
  %v44 = vlaneseq
  %v45 = vshrl.u32 %v44, 7
  %v46 = vsub.s32 0, %v45
  %v47 = vrot.slane %v42, %v46
  %v65 = vunpack.c.l.b16 %v26
  %v66 = vunpack.c.l.b16 %v27
  %v67 = vunpack.c.l.b16 %v28
  %v68 = vunpack.c.l.b16 %v29
  %v69 = vunpack.c.l.b16 %v30
  %v70 = vunpack.c.l.b16 %v31
  %v71 = vunpack.c.l.b16 %v32
  %v72 = vunpack.c.l.b16 %v33
  %v73 = vunpack.c.l.b16 %v34
  %v74 = vunpack.c.l.b16 %v35
  %v75 = vunpack.c.l.b16 %v36
  %v76 = vunpack.c.l.b16 %v37
  %v77 = vunpack.c.l.b16 %v38
  %v78 = vunpack.c.l.b16 %v39
  %v79 = vunpack.c.l.b16 %v40
  %v80 = vunpack.c.l.b16 %v41
  %v81 = vpack.c.b16 %v66, %v65
  %v82 = vpack.c.b16 %v68, %v67
  %v83 = vpack.c.b16 %v70, %v69
  %v84 = vpack.c.b16 %v72, %v71
  %v85 = vpack.c.b16 %v74, %v73
  %v86 = vpack.c.b16 %v76, %v75
  %v87 = vpack.c.b16 %v78, %v77
  %v88 = vpack.c.b16 %v80, %v79
  %97 = vmatprep.subr.bf16.mxu0 0
  %98 = vmatpush1.bf16.msra.mxu0 %v81
  %99 = vmatprep.subr.bf16.mxu0 0
  %100 = vmatpush1.bf16.msra.mxu0 %v82
  %101 = vmatprep.subr.bf16.mxu0 0
  %102 = vmatpush1.bf16.msra.mxu0 %v83
  %103 = vmatprep.subr.bf16.mxu0 0
  %104 = vmatpush1.bf16.msra.mxu0 %v84
  %105 = vmatprep.subr.bf16.mxu0 0
  %106 = vmatpush1.bf16.msra.mxu0 %v85
  %107 = vmatprep.subr.bf16.mxu0 0
  %108 = vmatpush1.bf16.msra.mxu0 %v86
  %109 = vmatprep.subr.bf16.mxu0 0
  %110 = vmatpush1.bf16.msra.mxu0 %v87
  %111 = vmatprep.subr.bf16.mxu0 0
  %112 = vmatpush1.bf16.msra.mxu0 %v88
  %113 = vmatprep.subr.bf16.mxu0 0
  %114 = vmatpush1.bf16.msra.mxu0 0
  %115 = vmatprep.subr.bf16.mxu0 0
  %116 = vmatpush1.bf16.msra.mxu0 0
  %117 = vmatprep.subr.bf16.mxu0 0
  %118 = vmatpush1.bf16.msra.mxu0 0
  %119 = vmatprep.subr.bf16.mxu0 0
  %120 = vmatpush1.bf16.msra.mxu0 0
  %121 = vmatprep.subr.bf16.mxu0 0
  %122 = vmatpush1.bf16.msra.mxu0 0
  %123 = vmatprep.subr.bf16.mxu0 0
  %124 = vmatpush1.bf16.msra.mxu0 0
  %125 = vmatprep.subr.bf16.mxu0 0
  %126 = vmatpush1.bf16.msra.mxu0 0
  %127 = vmatprep.subr.bf16.mxu0 0
  %128 = vmatpush1.bf16.msra.mxu0 0
  %129 = vmatprep.mubr.bf16.mxu0 0
  %130 = vmatmul.mubr.bf16.gmra.mrb[0].mxu0 %v25
  %v131 = vpop.f32.mrb[0].mxu0
  %v132 = vadd.f32 %v47, %v131
  %v133 = vpop.f32.mrb[0].mxu0
  %v134 = vpop.f32.mrb[0].mxu0
  %v135 = vadd.f32 %v47, %v134
  %v136 = vpop.f32.mrb[0].mxu0
  %137 = vdwg.mxu0
  %v138 = vmax.f32 %v132, 0.0
  %v139 = vmax.f32 %v135, 0.0
  %v140 = vpack.c.bf16 %v139, %v138
  %v141 = vld [vmem:[%s3] sm:$0xf]
  %v142 = vld [vmem:[%s3 + $0x4] sm:$0xf]
  %v143 = vld [vmem:[%s3 + $0x8] sm:$0xf]
  %v144 = vld [vmem:[%s3 + $0xc] sm:$0xf]
  %v145 = vld [vmem:[%s3 + $0x10] sm:$0xf]
  %v146 = vld [vmem:[%s3 + $0x14] sm:$0xf]
  %v147 = vld [vmem:[%s3 + $0x18] sm:$0xf]
  %v148 = vld [vmem:[%s3 + $0x1c] sm:$0xf]
  %v149 = vld [vmem:[%s3 + $0x20] sm:$0xf]
  %v150 = vld [vmem:[%s3 + $0x24] sm:$0xf]
  %v151 = vld [vmem:[%s3 + $0x28] sm:$0xf]
  %v152 = vld [vmem:[%s3 + $0x2c] sm:$0xf]
  %v153 = vld [vmem:[%s3 + $0x30] sm:$0xf]
  %v154 = vld [vmem:[%s3 + $0x34] sm:$0xf]
  %v155 = vld [vmem:[%s3 + $0x38] sm:$0xf]
  %v156 = vld [vmem:[%s3 + $0x3c] sm:$0xf]
  %v157 = vld [vmem:[%s4] sm:$0x1]
  %v159 = vlaneseq
  %v160 = vshrl.u32 %v159, 7
  %v161 = vsub.s32 0, %v160
  %v162 = vrot.slane %v157, %v161
  %v180 = vunpack.c.l.b16 %v141
  %v181 = vunpack.c.l.b16 %v142
  %v182 = vunpack.c.l.b16 %v143
  %v183 = vunpack.c.l.b16 %v144
  %v184 = vunpack.c.l.b16 %v145
  %v185 = vunpack.c.l.b16 %v146
  %v186 = vunpack.c.l.b16 %v147
  %v187 = vunpack.c.l.b16 %v148
  %v188 = vunpack.c.l.b16 %v149
  %v189 = vunpack.c.l.b16 %v150
  %v190 = vunpack.c.l.b16 %v151
  %v191 = vunpack.c.l.b16 %v152
  %v192 = vunpack.c.l.b16 %v153
  %v193 = vunpack.c.l.b16 %v154
  %v194 = vunpack.c.l.b16 %v155
  %v195 = vunpack.c.l.b16 %v156
  %v196 = vpack.c.b16 %v181, %v180
  %v197 = vpack.c.b16 %v183, %v182
  %v198 = vpack.c.b16 %v185, %v184
  %v199 = vpack.c.b16 %v187, %v186
  %v200 = vpack.c.b16 %v189, %v188
  %v201 = vpack.c.b16 %v191, %v190
  %v202 = vpack.c.b16 %v193, %v192
  %v203 = vpack.c.b16 %v195, %v194
  %212 = vmatprep.subr.bf16.mxu0 0
  %213 = vmatpush1.bf16.msra.mxu0 %v196
  %214 = vmatprep.subr.bf16.mxu0 0
  %215 = vmatpush1.bf16.msra.mxu0 %v197
  %216 = vmatprep.subr.bf16.mxu0 0
  %217 = vmatpush1.bf16.msra.mxu0 %v198
  %218 = vmatprep.subr.bf16.mxu0 0
  %219 = vmatpush1.bf16.msra.mxu0 %v199
  %220 = vmatprep.subr.bf16.mxu0 0
  %221 = vmatpush1.bf16.msra.mxu0 %v200
  %222 = vmatprep.subr.bf16.mxu0 0
  %223 = vmatpush1.bf16.msra.mxu0 %v201
  %224 = vmatprep.subr.bf16.mxu0 0
  %225 = vmatpush1.bf16.msra.mxu0 %v202
  %226 = vmatprep.subr.bf16.mxu0 0
  %227 = vmatpush1.bf16.msra.mxu0 %v203
  %228 = vmatprep.subr.bf16.mxu0 0
  %229 = vmatpush1.bf16.msra.mxu0 0
  %230 = vmatprep.subr.bf16.mxu0 0
  %231 = vmatpush1.bf16.msra.mxu0 0
  %232 = vmatprep.subr.bf16.mxu0 0
  %233 = vmatpush1.bf16.msra.mxu0 0
  %234 = vmatprep.subr.bf16.mxu0 0
  %235 = vmatpush1.bf16.msra.mxu0 0
  %236 = vmatprep.subr.bf16.mxu0 0
  %237 = vmatpush1.bf16.msra.mxu0 0
  %238 = vmatprep.subr.bf16.mxu0 0
  %239 = vmatpush1.bf16.msra.mxu0 0
  %240 = vmatprep.subr.bf16.mxu0 0
  %241 = vmatpush1.bf16.msra.mxu0 0
  %242 = vmatprep.subr.bf16.mxu0 0
  %243 = vmatpush1.bf16.msra.mxu0 0
  %244 = vmatprep.mubr.bf16.mxu0 0
  %245 = vmatmul.mubr.bf16.gmra.mrb[0].mxu0 %v140
  %v246 = vpop.f32.mrb[0].mxu0
  %v247 = vadd.f32 %v162, %v246
  %v248 = vpop.f32.mrb[0].mxu0
  %v249 = vpop.f32.mrb[0].mxu0
  %v250 = vadd.f32 %v162, %v249
  %v251 = vpop.f32.mrb[0].mxu0
  %252 = vdwg.mxu0
  %v253 = vadd.f32 %v21, %v247
  %v254 = vadd.f32 %v22, %v250
  %255 = vst [vmem:[%s5] sm:$0xff] %v253
  %256 = vst [vmem:[%s5 + $0x8] sm:$0xff] %v254
  // Predicated region
  $region22: #{_resblock_impl.1} parent=0 // pred_check
    _
  $region23: #{_resblock_impl.1} parent=0 // pred_check_branch
    %258 = sbr.rel (0) target = $region25
  $region24: #{_resblock_impl.1} parent=0 // pred_region
    _
  $region25: #{_resblock_impl.1} parent=0 // pred_fallthru
    _
  // Predicated region
  $region26: #{_resblock_impl.1} parent=0 // pred_check
    _
  $region27: #{_resblock_impl.1} parent=0 // pred_check_branch
    %260 = sbr.rel (0) target = $region29
  $region28: #{_resblock_impl.1} parent=0 // pred_region
    _
  $region29: #{_resblock_impl.1} parent=0 // pred_fallthru
    _

// kernel: _resblock_impl.1
$region0: #{_resblock_impl.1}
  #allocation0 [shape = 'u32[]', space=smem, size = 0x4, offset = 0x4, fixed_abs, tag = 'smem constant byte address 0x4 - core index']
  #allocation1 [shape = 'u32[144,128]{1,0:T(1,128)}', space=vmem, size = 0x12000, scoped, tag = 'internal scratch']
  %s0 = inlined_call_operand.vmem [shape: f32[16,128], index: 0, kind: input, shape index: {}]
  %s1 = inlined_call_operand.vmem [shape: bf16[128,128], index: 1, kind: input, shape index: {}]
  %s2 = inlined_call_operand.vmem [shape: f32[1,128], index: 2, kind: input, shape index: {}]
  %s3 = inlined_call_operand.vmem [shape: bf16[128,128], index: 3, kind: input, shape index: {}]
  %s4 = inlined_call_operand.vmem [shape: f32[1,128], index: 4, kind: input, shape index: {}]
  %s5 = inlined_call_operand.vmem [shape: f32[16,128], index: 5, kind: output, shape index: {}]
  %s6 = sld [smem:[#allocation0]]
  $region30: #{_resblock_impl.1} parent=0
    _
  %s8 = ssub.s32 1, %s6
  %s9 = scalar_select 0, %s8, %s6
  // Predicated region
  $region2: #{_resblock_impl.1} parent=0 // pred_check
    _
  $region3: #{_resblock_impl.1} parent=0 // pred_check_branch
    %11 = sbr.rel (0) target = $region5
  $region4: #{_resblock_impl.1} parent=0 // pred_region
    _
  $region5: #{_resblock_impl.1} parent=0 // pred_fallthru
    _
  // Predicated region
  $region6: #{_resblock_impl.1} parent=0 // pred_check
    _
  $region7: #{_resblock_impl.1} parent=0 // pred_check_branch
    %13 = sbr.rel (0) target = $region9
  $region8: #{_resblock_impl.1} parent=0 // pred_region
    _
  $region9: #{_resblock_impl.1} parent=0 // pred_fallthru
    _
  // Predicated region
  $region10: #{_resblock_impl.1} parent=0 // pred_check
    _
  $region11: #{_resblock_impl.1} parent=0 // pred_check_branch
    %15 = sbr.rel (0) target = $region13
  $region12: #{_resblock_impl.1} parent=0 // pred_region
    _
  $region13: #{_resblock_impl.1} parent=0 // pred_fallthru
    _
  // Predicated region
  $region14: #{_resblock_impl.1} parent=0 // pred_check
    _
  $region15: #{_resblock_impl.1} parent=0 // pred_check_branch
    %17 = sbr.rel (0) target = $region17
  $region16: #{_resblock_impl.1} parent=0 // pred_region
    _
  $region17: #{_resblock_impl.1} parent=0 // pred_fallthru
    _
  // Predicated region
  $region18: #{_resblock_impl.1} parent=0 // pred_check
    _
  $region19: #{_resblock_impl.1} parent=0 // pred_check_branch
    %19 = sbr.rel (0) target = $region21
  $region20: #{_resblock_impl.1} parent=0 // pred_region
    _
  $region21: #{_resblock_impl.1} parent=0 // pred_fallthru
    _
  %v21 = vld [vmem:[%s0] sm:$0xff]
  %v22 = vld [vmem:[%s0 + $0x8] sm:$0xff]
  %v23 = vmax.f32 %v21, 0.0
  %v24 = vmax.f32 %v22, 0.0
  %v25 = vpack.c.bf16 %v24, %v23
  %v26 = vld [vmem:[%s1] sm:$0xf]
  %v27 = vld [vmem:[%s1 + $0x4] sm:$0xf]
  %v28 = vld [vmem:[%s1 + $0x8] sm:$0xf]
  %v29 = vld [vmem:[%s1 + $0xc] sm:$0xf]
  %v30 = vld [vmem:[%s1 + $0x10] sm:$0xf]
  %v31 = vld [vmem:[%s1 + $0x14] sm:$0xf]
  %v32 = vld [vmem:[%s1 + $0x18] sm:$0xf]
  %v33 = vld [vmem:[%s1 + $0x1c] sm:$0xf]
  %v34 = vld [vmem:[%s1 + $0x20] sm:$0xf]
  %v35 = vld [vmem:[%s1 + $0x24] sm:$0xf]
  %v36 = vld [vmem:[%s1 + $0x28] sm:$0xf]
  %v37 = vld [vmem:[%s1 + $0x2c] sm:$0xf]
  %v38 = vld [vmem:[%s1 + $0x30] sm:$0xf]
  %v39 = vld [vmem:[%s1 + $0x34] sm:$0xf]
  %v40 = vld [vmem:[%s1 + $0x38] sm:$0xf]
  %v41 = vld [vmem:[%s1 + $0x3c] sm:$0xf]
  %v42 = vld [vmem:[%s2] sm:$0x1]
  %v44 = vlaneseq
  %v45 = vshrl.u32 %v44, 7
  %v46 = vsub.s32 0, %v45
  %v47 = vrot.slane %v42, %v46
  %v65 = vunpack.c.l.b16 %v26
  %v66 = vunpack.c.l.b16 %v27
  %v67 = vunpack.c.l.b16 %v28
  %v68 = vunpack.c.l.b16 %v29
  %v69 = vunpack.c.l.b16 %v30
  %v70 = vunpack.c.l.b16 %v31
  %v71 = vunpack.c.l.b16 %v32
  %v72 = vunpack.c.l.b16 %v33
  %v73 = vunpack.c.l.b16 %v34
  %v74 = vunpack.c.l.b16 %v35
  %v75 = vunpack.c.l.b16 %v36
  %v76 = vunpack.c.l.b16 %v37
  %v77 = vunpack.c.l.b16 %v38
  %v78 = vunpack.c.l.b16 %v39
  %v79 = vunpack.c.l.b16 %v40
  %v80 = vunpack.c.l.b16 %v41
  %v81 = vpack.c.b16 %v66, %v65
  %v82 = vpack.c.b16 %v68, %v67
  %v83 = vpack.c.b16 %v70, %v69
  %v84 = vpack.c.b16 %v72, %v71
  %v85 = vpack.c.b16 %v74, %v73
  %v86 = vpack.c.b16 %v76, %v75
  %v87 = vpack.c.b16 %v78, %v77
  %v88 = vpack.c.b16 %v80, %v79
  %97 = vmatprep.subr.bf16.mxu0 0
  %98 = vmatpush1.bf16.msra.mxu0 %v81
  %99 = vmatprep.subr.bf16.mxu0 0
  %100 = vmatpush1.bf16.msra.mxu0 %v82
  %101 = vmatprep.subr.bf16.mxu0 0
  %102 = vmatpush1.bf16.msra.mxu0 %v83
  %103 = vmatprep.subr.bf16.mxu0 0
  %104 = vmatpush1.bf16.msra.mxu0 %v84
  %105 = vmatprep.subr.bf16.mxu0 0
  %106 = vmatpush1.bf16.msra.mxu0 %v85
  %107 = vmatprep.subr.bf16.mxu0 0
  %108 = vmatpush1.bf16.msra.mxu0 %v86
  %109 = vmatprep.subr.bf16.mxu0 0
  %110 = vmatpush1.bf16.msra.mxu0 %v87
  %111 = vmatprep.subr.bf16.mxu0 0
  %112 = vmatpush1.bf16.msra.mxu0 %v88
  %113 = vmatprep.subr.bf16.mxu0 0
  %114 = vmatpush1.bf16.msra.mxu0 0
  %115 = vmatprep.subr.bf16.mxu0 0
  %116 = vmatpush1.bf16.msra.mxu0 0
  %117 = vmatprep.subr.bf16.mxu0 0
  %118 = vmatpush1.bf16.msra.mxu0 0
  %119 = vmatprep.subr.bf16.mxu0 0
  %120 = vmatpush1.bf16.msra.mxu0 0
  %121 = vmatprep.subr.bf16.mxu0 0
  %122 = vmatpush1.bf16.msra.mxu0 0
  %123 = vmatprep.subr.bf16.mxu0 0
  %124 = vmatpush1.bf16.msra.mxu0 0
  %125 = vmatprep.subr.bf16.mxu0 0
  %126 = vmatpush1.bf16.msra.mxu0 0
  %127 = vmatprep.subr.bf16.mxu0 0
  %128 = vmatpush1.bf16.msra.mxu0 0
  %129 = vmatprep.mubr.bf16.mxu0 0
  %130 = vmatmul.mubr.bf16.gmra.mrb[0].mxu0 %v25
  %v131 = vpop.f32.mrb[0].mxu0
  %v132 = vadd.f32 %v47, %v131
  %v133 = vpop.f32.mrb[0].mxu0
  %v134 = vpop.f32.mrb[0].mxu0
  %v135 = vadd.f32 %v47, %v134
  %v136 = vpop.f32.mrb[0].mxu0
  %137 = vdwg.mxu0
  %v138 = vmax.f32 %v132, 0.0
  %v139 = vmax.f32 %v135, 0.0
  %v140 = vpack.c.bf16 %v139, %v138
  %v141 = vld [vmem:[%s3] sm:$0xf]
  %v142 = vld [vmem:[%s3 + $0x4] sm:$0xf]
  %v143 = vld [vmem:[%s3 + $0x8] sm:$0xf]
  %v144 = vld [vmem:[%s3 + $0xc] sm:$0xf]
  %v145 = vld [vmem:[%s3 + $0x10] sm:$0xf]
  %v146 = vld [vmem:[%s3 + $0x14] sm:$0xf]
  %v147 = vld [vmem:[%s3 + $0x18] sm:$0xf]
  %v148 = vld [vmem:[%s3 + $0x1c] sm:$0xf]
  %v149 = vld [vmem:[%s3 + $0x20] sm:$0xf]
  %v150 = vld [vmem:[%s3 + $0x24] sm:$0xf]
  %v151 = vld [vmem:[%s3 + $0x28] sm:$0xf]
  %v152 = vld [vmem:[%s3 + $0x2c] sm:$0xf]
  %v153 = vld [vmem:[%s3 + $0x30] sm:$0xf]
  %v154 = vld [vmem:[%s3 + $0x34] sm:$0xf]
  %v155 = vld [vmem:[%s3 + $0x38] sm:$0xf]
  %v156 = vld [vmem:[%s3 + $0x3c] sm:$0xf]
  %v157 = vld [vmem:[%s4] sm:$0x1]
  %v159 = vlaneseq
  %v160 = vshrl.u32 %v159, 7
  %v161 = vsub.s32 0, %v160
  %v162 = vrot.slane %v157, %v161
  %v180 = vunpack.c.l.b16 %v141
  %v181 = vunpack.c.l.b16 %v142
  %v182 = vunpack.c.l.b16 %v143
  %v183 = vunpack.c.l.b16 %v144
  %v184 = vunpack.c.l.b16 %v145
  %v185 = vunpack.c.l.b16 %v146
  %v186 = vunpack.c.l.b16 %v147
  %v187 = vunpack.c.l.b16 %v148
  %v188 = vunpack.c.l.b16 %v149
  %v189 = vunpack.c.l.b16 %v150
  %v190 = vunpack.c.l.b16 %v151
  %v191 = vunpack.c.l.b16 %v152
  %v192 = vunpack.c.l.b16 %v153
  %v193 = vunpack.c.l.b16 %v154
  %v194 = vunpack.c.l.b16 %v155
  %v195 = vunpack.c.l.b16 %v156
  %v196 = vpack.c.b16 %v181, %v180
  %v197 = vpack.c.b16 %v183, %v182
  %v198 = vpack.c.b16 %v185, %v184
  %v199 = vpack.c.b16 %v187, %v186
  %v200 = vpack.c.b16 %v189, %v188
  %v201 = vpack.c.b16 %v191, %v190
  %v202 = vpack.c.b16 %v193, %v192
  %v203 = vpack.c.b16 %v195, %v194
  %212 = vmatprep.subr.bf16.mxu0 0
  %213 = vmatpush1.bf16.msra.mxu0 %v196
  %214 = vmatprep.subr.bf16.mxu0 0
  %215 = vmatpush1.bf16.msra.mxu0 %v197
  %216 = vmatprep.subr.bf16.mxu0 0
  %217 = vmatpush1.bf16.msra.mxu0 %v198
  %218 = vmatprep.subr.bf16.mxu0 0
  %219 = vmatpush1.bf16.msra.mxu0 %v199
  %220 = vmatprep.subr.bf16.mxu0 0
  %221 = vmatpush1.bf16.msra.mxu0 %v200
  %222 = vmatprep.subr.bf16.mxu0 0
  %223 = vmatpush1.bf16.msra.mxu0 %v201
  %224 = vmatprep.subr.bf16.mxu0 0
  %225 = vmatpush1.bf16.msra.mxu0 %v202
  %226 = vmatprep.subr.bf16.mxu0 0
  %227 = vmatpush1.bf16.msra.mxu0 %v203
  %228 = vmatprep.subr.bf16.mxu0 0
  %229 = vmatpush1.bf16.msra.mxu0 0
  %230 = vmatprep.subr.bf16.mxu0 0
  %231 = vmatpush1.bf16.msra.mxu0 0
  %232 = vmatprep.subr.bf16.mxu0 0
  %233 = vmatpush1.bf16.msra.mxu0 0
  %234 = vmatprep.subr.bf16.mxu0 0
  %235 = vmatpush1.bf16.msra.mxu0 0
  %236 = vmatprep.subr.bf16.mxu0 0
  %237 = vmatpush1.bf16.msra.mxu0 0
  %238 = vmatprep.subr.bf16.mxu0 0
  %239 = vmatpush1.bf16.msra.mxu0 0
  %240 = vmatprep.subr.bf16.mxu0 0
  %241 = vmatpush1.bf16.msra.mxu0 0
  %242 = vmatprep.subr.bf16.mxu0 0
  %243 = vmatpush1.bf16.msra.mxu0 0
  %244 = vmatprep.mubr.bf16.mxu0 0
  %245 = vmatmul.mubr.bf16.gmra.mrb[0].mxu0 %v140
  %v246 = vpop.f32.mrb[0].mxu0
  %v247 = vadd.f32 %v162, %v246
  %v248 = vpop.f32.mrb[0].mxu0
  %v249 = vpop.f32.mrb[0].mxu0
  %v250 = vadd.f32 %v162, %v249
  %v251 = vpop.f32.mrb[0].mxu0
  %252 = vdwg.mxu0
  %v253 = vadd.f32 %v21, %v247
  %v254 = vadd.f32 %v22, %v250
  %255 = vst [vmem:[%s5] sm:$0xff] %v253
  %256 = vst [vmem:[%s5 + $0x8] sm:$0xff] %v254
  // Predicated region
  $region22: #{_resblock_impl.1} parent=0 // pred_check
    _
  $region23: #{_resblock_impl.1} parent=0 // pred_check_branch
    %258 = sbr.rel (0) target = $region25
  $region24: #{_resblock_impl.1} parent=0 // pred_region
    _
  $region25: #{_resblock_impl.1} parent=0 // pred_fallthru
    _
  // Predicated region
  $region26: #{_resblock_impl.1} parent=0 // pred_check
    _
  $region27: #{_resblock_impl.1} parent=0 // pred_check_branch
    %260 = sbr.rel (0) target = $region29
  $region28: #{_resblock_impl.1} parent=0 // pred_region
    _
  $region29: #{_resblock_impl.1} parent=0 // pred_fallthru
    _

</llo_original>
